<compile_context>
chip_gen: v7x
topology: tpu7x:2x2x1
jax: 0.10.0
libtpu: 0.0.40
codegen_flags: <defaults>
</compile_context>

<pallas_src>
import math
from functools import partial

import jax
import jax.numpy as jnp
from jax import lax
from jax.experimental import pallas as pl
from jax.experimental.pallas import tpu as pltpu


# ----------------------------------------------------------------------------
# Helpers
# ----------------------------------------------------------------------------

def _round_up(x, m):
    return ((x + m - 1) // m) * m


def _clamp(v, lo, hi):
    return int(max(lo, min(hi, v)))


def _gelu_exact(x):
    # torch.nn.GELU() default = exact erf-based gelu
    return 0.5 * x * (1.0 + lax.erf(x * (1.0 / math.sqrt(2.0))))


def _vmem_capacity_bytes():
    """Per-generation physical VMEM (64 MiB on v7x, 128 MiB on v5e/v6e)."""
    try:
        info = pltpu.get_tpu_info()
        cap = getattr(info, "vmem_capacity_bytes", None)
        if cap:
            return int(cap)
    except Exception:
        pass
    return 64 << 20  # conservative fallback (v7x per-TC)


def _choose_col_tile(total_cols, k_dim, budget_bytes, max_tile=1024):
    """Largest column tile TN (multiple of 128, divides total_cols, <= max_tile)
    whose double-buffered bf16 weight footprint (2 operands x 2 buffers) fits
    `budget_bytes`.  Falls back to 128."""
    assert total_cols % 128 == 0
    m = total_cols // 128
    best = 128
    for d in range(1, m + 1):
        if m % d != 0:
            continue
        tn = d * 128
        if tn > max_tile:
            break
        if 8 * k_dim * tn <= budget_bytes:
            best = tn
    return best


# ----------------------------------------------------------------------------
# Stage 1: fused GRU gate matmuls, pipelined over weight-column tiles.
# ----------------------------------------------------------------------------

def _gate_matmul_kernel(x_ref, h_ref, w_i_ref, w_h_ref, gi_ref, gh_ref):
    # x_ref/h_ref: [B, H] f32 (constant block, fetched once)
    # w_i_ref/w_h_ref: [H, TN] bf16 column tile (double-buffered by pipeline)
    # gi_ref/gh_ref: [B, TN] f32 lane-dense output tiles
    x = x_ref[...].astype(jnp.bfloat16)
    h = h_ref[...].astype(jnp.bfloat16)
    gi_ref[...] = jnp.dot(x, w_i_ref[...], preferred_element_type=jnp.float32)
    gh_ref[...] = jnp.dot(h, w_h_ref[...], preferred_element_type=jnp.float32)


# ----------------------------------------------------------------------------
# Stage 2: GRU gate math + continue predictor (single shot).
# ----------------------------------------------------------------------------

def _combine_kernel(
    gi_ref,          # [B, 3*Hp] f32  x-path gates (r | z | n), per-gate padded
    gh_ref,          # [B, 3*Hp] f32  h-path gates
    state_ref,       # [B, H]  f32    previous reasoning state (aliased to out 0)
    bias_ref,        # [4, H]  f32    rows: b_ir+b_hr, b_iz+b_hz, b_in, b_hn
    w1_ref,          # [H, H]  bf16   continue_predictor Linear-1 (pre-transposed)
    b1_ref,          # [1, H]  f32
    w2_ref,          # [1, H]  f32    continue_predictor Linear-2 weight as a row
    b2_ref,          # [1, 1]  f32
    new_state_ref,   # out [B, H] f32
    prob_ref,        # out [B, 1] f32
    *, hidden_size, h_pad,
):
    H = hidden_size
    h_prev = state_ref[...]

    def gate(g_ref, k):
        # lane-aligned start (k * h_pad is a multiple of 128)
        return g_ref[:, k * h_pad:k * h_pad + H]

    b_r = bias_ref[0:1, :]    # b_ir + b_hr
    b_z = bias_ref[1:2, :]    # b_iz + b_hz
    b_in = bias_ref[2:3, :]
    b_hn = bias_ref[3:4, :]

    # PyTorch GRUCell gate ordering (r, z, n); b_hn stays inside r*(...).
    r = jax.nn.sigmoid(gate(gi_ref, 0) + gate(gh_ref, 0) + b_r)
    z = jax.nn.sigmoid(gate(gi_ref, 1) + gate(gh_ref, 1) + b_z)
    n = jnp.tanh(gate(gi_ref, 2) + b_in + r * (gate(gh_ref, 2) + b_hn))
    h_new = (1.0 - z) * n + z * h_prev                           # [B, H] f32

    # continue_predictor: Linear -> GELU -> (Dropout = identity, eval) -> Linear -> sigmoid
    mid = _gelu_exact(
        jnp.dot(h_new.astype(jnp.bfloat16), w1_ref[...],
                preferred_element_type=jnp.float32) + b1_ref[...]
    )                                                            # [B, H] f32
    # Final Linear(H, 1) as VPU multiply + lane reduce (keeps the MXU free).
    logits = jnp.sum(mid * w2_ref[...], axis=-1, keepdims=True) + b2_ref[...]
    prob = jax.nn.sigmoid(logits)

    new_state_ref[...] = h_new.astype(new_state_ref.dtype)
    prob_ref[...] = prob.astype(prob_ref.dtype)


# ----------------------------------------------------------------------------
# Wrapper
# ----------------------------------------------------------------------------

def recursive_reasoning_controller(hidden_states, reasoning_state, params):
    """hidden_states: [B, S, H]; reasoning_state: [B, H] or None; params packed."""
    B, S, H = hidden_states.shape
    h_pad = int(params["h_pad"])
    cols = 3 * h_pad

    # Sequence-mean pooling in the wrapper: the kernel only ever sees [B, H].
    x_pooled = jnp.mean(hidden_states.astype(jnp.float32), axis=1)   # [B, H]

    if reasoning_state is None:
        reasoning_state = jnp.zeros((B, H), dtype=jnp.float32)
    else:
        reasoning_state = reasoning_state.astype(jnp.float32)

    # Per-generation VMEM budget: half of physical, capped at 48 MiB
    # (=> <=32 MiB on v7x's 64 MiB parts, <=48 MiB on v5e/v6e's 128 MiB parts).
    vmem_cap = min(_vmem_capacity_bytes() // 2, 48 << 20)

    # --- Stage 1: gate matmuls, gridded over weight columns -----------------
    weight_budget = max(4 << 20, vmem_cap - (16 << 20))
    tn = _choose_col_tile(cols, H, weight_budget)
    n_tiles = cols // tn

    est1 = (2 * B * H * 4          # x, h (f32, single buffers)
            + 8 * H * tn           # W_i, W_h bf16, double-buffered
            + 16 * B * tn          # gates_i / gates_h f32, double-buffered
            + 4 * B * tn * 4)      # compute intermediates
    vmem1 = _clamp(est1 + (8 << 20), 16 << 20, vmem_cap)

    gate_grid = pltpu.PrefetchScalarGridSpec(
        num_scalar_prefetch=0,
        grid=(n_tiles,),
        in_specs=[
            pl.BlockSpec((B, H), lambda j: (0, 0)),    # x (fetched once)
            pl.BlockSpec((B, H), lambda j: (0, 0)),    # h (fetched once)
            pl.BlockSpec((H, tn), lambda j: (0, j)),   # W_i column tile
            pl.BlockSpec((H, tn), lambda j: (0, j)),   # W_h column tile
        ],
        out_specs=(
            pl.BlockSpec((B, tn), lambda j: (0, j)),   # gates_i tile
            pl.BlockSpec((B, tn), lambda j: (0, j)),   # gates_h tile
        ),
    )

    gates_i, gates_h = pl.pallas_call(
        _gate_matmul_kernel,
        out_shape=(jax.ShapeDtypeStruct((B, cols), jnp.float32),
                   jax.ShapeDtypeStruct((B, cols), jnp.float32)),
        grid_spec=gate_grid,
        compiler_params=pltpu.CompilerParams(
            dimension_semantics=("parallel",),   # megacore splits weight stream
            vmem_limit_bytes=vmem1),
    )(x_pooled, reasoning_state, params["w_i"], params["w_h"])

    # --- Stage 2: GRU combine + continue predictor (single shot) ------------
    est2 = (2 * B * cols * 4       # gates_i, gates_h
            + B * H * 4            # h_prev
            + 4 * H * 4            # fused GRU biases
            + H * H * 2            # w1 bf16
            + 2 * H * 4 + 4        # b1, w2_row, b2
            + 6 * B * H * 4        # gate / h_new / mid intermediates
            + B * 128 * 4)         # padded prob output
    vmem2 = _clamp(est2 + (8 << 20), 16 << 20, vmem_cap)

    vmem_spec = pl.BlockSpec(memory_space=pltpu.MemorySpace.VMEM)

    new_state, prob = pl.pallas_call(
        partial(_combine_kernel, hidden_size=H, h_pad=h_pad),
        out_shape=(jax.ShapeDtypeStruct((B, H), jnp.float32),
                   jax.ShapeDtypeStruct((B, 1), jnp.float32)),
        in_specs=[vmem_spec] * 8,
        out_specs=(vmem_spec, vmem_spec),
        # reasoning_state is a pure in-place state update -> alias its buffer.
        input_output_aliases={2: 0},
        compiler_params=pltpu.CompilerParams(vmem_limit_bytes=vmem2),
    )(gates_i, gates_h, reasoning_state, params["bias_gru"],
      params["w1"], params["b1"], params["w2_row"], params["b2"])

    return {"reasoning_state": new_state, "continue_probability": prob}


# ----------------------------------------------------------------------------
# Parameter construction: raw per-gate (PyTorch-style) params for the f32
# reference, and a packed/fused/bf16 version for the kernel.
# ----------------------------------------------------------------------------

def init_raw_params(key, hidden_size):
    """Per-gate f32 params mimicking PyTorch shapes (weights pre-transposed [in, out])."""
    H = hidden_size
    k = 1.0 / math.sqrt(H)
    keys = jax.random.split(key, 16)

    def u(kk, shape):
        return jax.random.uniform(kk, shape, jnp.float32, minval=-k, maxval=k)

    return {
        "w_ir": u(keys[0], (H, H)), "w_iz": u(keys[1], (H, H)), "w_in": u(keys[2], (H, H)),
        "w_hr": u(keys[3], (H, H)), "w_hz": u(keys[4], (H, H)), "w_hn": u(keys[5], (H, H)),
        "b_ir": u(keys[6], (H,)), "b_iz": u(keys[7], (H,)), "b_in": u(keys[8], (H,)),
        "b_hr": u(keys[9], (H,)), "b_hz": u(keys[10], (H,)), "b_hn": u(keys[11], (H,)),
        "w1": u(keys[12], (H, H)), "b1": u(keys[13], (H,)),
        "w2": u(keys[14], (H, 1)), "b2": u(keys[15], (1,)),
    }


def pack_params(p):
    """Fuse GRU gate weights (each gate padded to a 128-lane boundary), fold
    the r/z biases, and cast matmul operands to bf16."""
    H = p["w1"].shape[0]
    h_pad = _round_up(H, 128)

    def pad_gate(w):  # [H, H] -> [H, h_pad] (zero columns in the pad region)
        return jnp.pad(w, ((0, 0), (0, h_pad - H)))

    w_i = jnp.concatenate(
        [pad_gate(p["w_ir"]), pad_gate(p["w_iz"]), pad_gate(p["w_in"])], axis=1
    ).astype(jnp.bfloat16)                                   # [H, 3*h_pad]
    w_h = jnp.concatenate(
        [pad_gate(p["w_hr"]), pad_gate(p["w_hz"]), pad_gate(p["w_hn"])], axis=1
    ).astype(jnp.bfloat16)                                   # [H, 3*h_pad]
    bias_gru = jnp.stack(
        [p["b_ir"] + p["b_hr"], p["b_iz"] + p["b_hz"], p["b_in"], p["b_hn"]], axis=0
    ).astype(jnp.float32)                                    # [4, H]
    return {
        "h_pad": h_pad,
        "w_i": w_i,                                          # [H, 3*h_pad] bf16
        "w_h": w_h,                                          # [H, 3*h_pad] bf16
        "bias_gru": bias_gru,                                # [4, H]  f32
        "w1": p["w1"].astype(jnp.bfloat16),                  # [H, H]  bf16
        "b1": p["b1"].reshape(1, H).astype(jnp.float32),     # [1, H]  f32
        "w2_row": p["w2"].reshape(1, H).astype(jnp.float32), # [1, H]  f32
        "b2": p["b2"].reshape(1, 1).astype(jnp.float32),     # [1, 1]  f32
    }


def _reference_jax(hidden_states, reasoning_state, p):
    """Pure-JAX f32 reference mirroring PyTorch semantics."""
    x = jnp.mean(hidden_states, axis=1)
    h = reasoning_state
    r = jax.nn.sigmoid(x @ p["w_ir"] + p["b_ir"] + h @ p["w_hr"] + p["b_hr"])
    z = jax.nn.sigmoid(x @ p["w_iz"] + p["b_iz"] + h @ p["w_hz"] + p["b_hz"])
    n = jnp.tanh(x @ p["w_in"] + p["b_in"] + r * (h @ p["w_hn"] + p["b_hn"]))
    h_new = (1.0 - z) * n + z * h
    mid = jax.nn.gelu(h_new @ p["w1"] + p["b1"], approximate=False)
    prob = jax.nn.sigmoid(mid @ p["w2"] + p["b2"])
    return h_new, prob


if __name__ == "__main__":
    B, S, H = 2, 8, 32
    key = jax.random.PRNGKey(0)
    k_hs, k_state, k_params = jax.random.split(key, 3)

    hidden_states = jax.random.normal(k_hs, (B, S, H), dtype=jnp.float32)
    reasoning_state = jax.random.normal(k_state, (B, H), dtype=jnp.float32)

    raw_params = init_raw_params(k_params, H)
    packed_params = pack_params(raw_params)

    # Reference first (kernel aliases the reasoning_state buffer into its output).
    ref_state, ref_prob = _reference_jax(hidden_states, reasoning_state, raw_params)

    out = recursive_reasoning_controller(hidden_states, reasoning_state, packed_params)
    new_state = jax.block_until_ready(out["reasoning_state"])
    prob = jax.block_until_ready(out["continue_probability"])

    assert new_state.shape == (B, H) and prob.shape == (B, 1)
    # bf16 matmuls -> compare with a correspondingly loose tolerance.
    assert jnp.allclose(new_state, ref_state, atol=2e-2, rtol=2e-2), (
        float(jnp.max(jnp.abs(new_state - ref_state))))
    assert jnp.allclose(prob, ref_prob, atol=2e-2, rtol=2e-2), (
        float(jnp.max(jnp.abs(prob - ref_prob))))

    print("KERNEL_OK")
</pallas_src>

<mosaic_0001>
module attributes {stable_mosaic.version = 11 : i64} {
  func.func @_gate_matmul_kernel(%arg0: i32, %arg1: memref<2x32xf32, #tpu.memory_space<vmem>>, %arg2: memref<2x32xf32, #tpu.memory_space<vmem>>, %arg3: memref<32x384xbf16, #tpu.memory_space<vmem>>, %arg4: memref<32x384xbf16, #tpu.memory_space<vmem>>, %arg5: memref<2x384xf32, #tpu.memory_space<vmem>>, %arg6: memref<2x384xf32, #tpu.memory_space<vmem>>) attributes {dimension_semantics = [#tpu.dimension_semantics<parallel>], iteration_bounds = array<i64: 1>, scalar_prefetch = 0 : i64, scratch_operands = 0 : i64, tpu.core_type = #tpu.core_type<tc>, window_params = [{pipeline_mode = #tpu.pipeline_mode<synchronous>, transform_indices = @transform_0, window_bounds = array<i64: 2, 32>}, {pipeline_mode = #tpu.pipeline_mode<synchronous>, transform_indices = @transform_1, window_bounds = array<i64: 2, 32>}, {transform_indices = @transform_2, window_bounds = array<i64: 32, 384>}, {transform_indices = @transform_3, window_bounds = array<i64: 32, 384>}, {transform_indices = @transform_4, window_bounds = array<i64: 2, 384>}, {transform_indices = @transform_5, window_bounds = array<i64: 2, 384>}]} {
    %c0 = arith.constant 0 : index
    %c0_0 = arith.constant 0 : index
    %0 = vector.load %arg1[%c0, %c0_0] : memref<2x32xf32, #tpu.memory_space<vmem>>, vector<2x32xf32>
    %1 = arith.truncf %0 : vector<2x32xf32> to vector<2x32xbf16>
    %c0_1 = arith.constant 0 : index
    %c0_2 = arith.constant 0 : index
    %2 = vector.load %arg2[%c0_1, %c0_2] : memref<2x32xf32, #tpu.memory_space<vmem>>, vector<2x32xf32>
    %3 = arith.truncf %2 : vector<2x32xf32> to vector<2x32xbf16>
    %c0_3 = arith.constant 0 : index
    %c0_4 = arith.constant 0 : index
    %4 = vector.load %arg3[%c0_3, %c0_4] : memref<32x384xbf16, #tpu.memory_space<vmem>>, vector<32x384xbf16>
    %cst = arith.constant dense<0.000000e+00> : vector<2x384xf32>
    %5 = tpu.matmul %1, %4, %cst {dimension_numbers = #tpu.dot_dimension_numbers<[1], [0], [0], [1], [0, 0, 1, 1], [], []>} : vector<2x32xbf16>, vector<32x384xbf16>, vector<2x384xf32> -> vector<2x384xf32>
    %c0_5 = arith.constant 0 : index
    %c0_6 = arith.constant 0 : index
    %6 = vector.load %arg5[%c0_5, %c0_6] : memref<2x384xf32, #tpu.memory_space<vmem>>, vector<2x384xf32>
    tpu.vector_store %arg5[%c0_5, %c0_6], %5 {strides = array<i32>} : memref<2x384xf32, #tpu.memory_space<vmem>>, vector<2x384xf32>,
    %c0_7 = arith.constant 0 : index
    %c0_8 = arith.constant 0 : index
    %7 = vector.load %arg4[%c0_7, %c0_8] : memref<32x384xbf16, #tpu.memory_space<vmem>>, vector<32x384xbf16>
    %cst_9 = arith.constant dense<0.000000e+00> : vector<2x384xf32>
    %8 = tpu.matmul %3, %7, %cst_9 {dimension_numbers = #tpu.dot_dimension_numbers<[1], [0], [0], [1], [0, 0, 1, 1], [], []>} : vector<2x32xbf16>, vector<32x384xbf16>, vector<2x384xf32> -> vector<2x384xf32>
    %c0_10 = arith.constant 0 : index
    %c0_11 = arith.constant 0 : index
    %9 = vector.load %arg6[%c0_10, %c0_11] : memref<2x384xf32, #tpu.memory_space<vmem>>, vector<2x384xf32>
    tpu.vector_store %arg6[%c0_10, %c0_11], %8 {strides = array<i32>} : memref<2x384xf32, #tpu.memory_space<vmem>>, vector<2x384xf32>,
    return
  }
  func.func @transform_0(%arg0: i32) -> (i32, i32) {
    %c0_i32 = arith.constant 0 : i32
    %c0_i32_0 = arith.constant 0 : i32
    %c0_i32_1 = arith.constant 0 : i32
    return %c0_i32, %c0_i32_0 : i32, i32
  }
  func.func @transform_1(%arg0: i32) -> (i32, i32) {
    %c0_i32 = arith.constant 0 : i32
    %c0_i32_0 = arith.constant 0 : i32
    %c0_i32_1 = arith.constant 0 : i32
    return %c0_i32, %c0_i32_0 : i32, i32
  }
  func.func @transform_2(%arg0: i32) -> (i32, i32) {
    %c0_i32 = arith.constant 0 : i32
    %c0_i32_0 = arith.constant 0 : i32
    return %c0_i32, %arg0 : i32, i32
  }
  func.func @transform_3(%arg0: i32) -> (i32, i32) {
    %c0_i32 = arith.constant 0 : i32
    %c0_i32_0 = arith.constant 0 : i32
    return %c0_i32, %arg0 : i32, i32
  }
  func.func @transform_4(%arg0: i32) -> (i32, i32) {
    %c0_i32 = arith.constant 0 : i32
    %c0_i32_0 = arith.constant 0 : i32
    return %c0_i32, %arg0 : i32, i32
  }
  func.func @transform_5(%arg0: i32) -> (i32, i32) {
    %c0_i32 = arith.constant 0 : i32
    %c0_i32_0 = arith.constant 0 : i32
    return %c0_i32, %arg0 : i32, i32
  }
}

</mosaic_0001>

<llo_original>
// kernel: tpu_custom_call.1
$region0: #{tpu_custom_call.1}
  #allocation0 [shape = 'u32[]', space=smem, size = 0x4, offset = 0x4, fixed_abs, tag = 'smem constant byte address 0x4 - core index']
  #allocation1 [shape = 'u32[144,128]{1,0:T(1,128)}', space=vmem, size = 0x12000, scoped, tag = 'internal scratch']
  %s0 = inlined_call_operand.hbm [shape: f32[2,32], index: 0, kind: input, shape index: {}]
  %s1 = inlined_call_operand.vmem [shape: f32[2,32], index: 1, kind: input, shape index: {}]
  %s2 = inlined_call_operand.hbm [shape: bf16[32,384], index: 2, kind: input, shape index: {}]
  %s3 = inlined_call_operand.hbm [shape: bf16[32,384], index: 3, kind: input, shape index: {}]
  %s4 = inlined_call_operand.hbm [shape: f32[2,384], index: 4, kind: output, shape index: {0}]
  %s5 = inlined_call_operand.hbm [shape: f32[2,384], index: 5, kind: output, shape index: {1}]
  %6 = xla_tuple %s4, %s5
  %s7 = sld [smem:[#allocation0]]
  $region46: #{tpu_custom_call.1} parent=0
    _
  %s9 = ssub.s32 1, %s7
  %s10 = scalar_select 0, %s9, %s7
  $region1: #{tpu_custom_call.1} parent=0
    #allocation2 [shape = 'u8[1024]{0}', space=vmem, size = 0x400, scoped, tag = 'input window, operand 0, single buffered']
    #allocation3 [shape = 's32[1]{0}', space=sflag, size = 0x4, scoped, tag = 'scoped memory for tpu_custom_call.1']
    #allocation4 [shape = 's32[1]{0}', space=sflag, size = 0x4, scoped, tag = 'scoped memory for tpu_custom_call.1']
    #allocation5 [shape = 'u8[24576]{0}', space=vmem, size = 0x6000, scoped, tag = 'input window, operand 2, single buffered']
    #allocation6 [shape = 's32[1]{0}', space=sflag, size = 0x4, scoped, tag = 'scoped memory for tpu_custom_call.1']
    #allocation7 [shape = 'u8[24576]{0}', space=vmem, size = 0x6000, scoped, tag = 'input window, operand 3, single buffered']
    #allocation8 [shape = 'u8[3072]{0}', space=vmem, size = 0xc00, scoped, tag = 'output window, operand 0, single buffered']
    #allocation9 [shape = 'u8[3072]{0}', space=vmem, size = 0xc00, scoped, tag = 'output window, operand 1, single buffered']
    #allocation10 [shape = 's32[1]{0}', space=sflag, size = 0x4, scoped, tag = 'scoped memory for tpu_custom_call.1']
    %11 = vsyncpa [#allocation3], 0
    %12 = vsyncpa [#allocation6], 0
    %13 = vsyncpa [#allocation4], 0
    %14 = vsyncpa [#allocation10], 0
    // Predicated region
    $region2: #{tpu_custom_call.1} parent=1 // pred_check
      _
    $region3: #{tpu_custom_call.1} parent=1 // pred_check_branch
      %16 = sbr.rel (0) target = $region5
    $region4: #{tpu_custom_call.1} parent=1 // pred_region
      %s18 = ssub.s32 32, 32
      %19 = vsyncadd [#allocation3], %s18
      %s21 = sshll.u32 [#allocation2], 4
      %s22 = int_to_ptr.vmem [resolvable:$true] %s21
      %24 = dma.hbm_to_vmem [thread:$0]  %s0, 32, %s22, [#allocation3]
    $region5: #{tpu_custom_call.1} parent=1 // pred_fallthru
      _
    // Predicated region
    $region6: #{tpu_custom_call.1} parent=1 // pred_check
      _
    $region7: #{tpu_custom_call.1} parent=1 // pred_check_branch
      %26 = sbr.rel (0) target = $region9
    $region8: #{tpu_custom_call.1} parent=1 // pred_region
      _
    $region9: #{tpu_custom_call.1} parent=1 // pred_fallthru
      _
    // Predicated region
    $region10: #{tpu_custom_call.1} parent=1 // pred_check
      _
    $region11: #{tpu_custom_call.1} parent=1 // pred_check_branch
      %28 = sbr.rel (0) target = $region13
    $region12: #{tpu_custom_call.1} parent=1 // pred_region
      %s30 = ssub.s32 768, 768
      %31 = vsyncadd [#allocation6], %s30
      %s32 = sshll.u32 [#allocation5], 4
      %s33 = int_to_ptr.vmem [resolvable:$true] %s32
      %38 = dma.hbm_to_vmem [thread:$0]  %s2, 768, %s33, [#allocation6], 192, 192, 12
    $region13: #{tpu_custom_call.1} parent=1 // pred_fallthru
      _
    // Predicated region
    $region14: #{tpu_custom_call.1} parent=1 // pred_check
      _
    $region15: #{tpu_custom_call.1} parent=1 // pred_check_branch
      %40 = sbr.rel (0) target = $region17
    $region16: #{tpu_custom_call.1} parent=1 // pred_region
      %s42 = ssub.s32 768, 768
      %43 = vsyncadd [#allocation6], %s42
      %s44 = sshll.u32 [#allocation7], 4
      %s45 = int_to_ptr.vmem [resolvable:$true] %s44
      %50 = dma.hbm_to_vmem [thread:$0]  %s3, 768, %s45, [#allocation6], 192, 192, 12
    $region17: #{tpu_custom_call.1} parent=1 // pred_fallthru
      _
    // Predicated region
    $region18: #{tpu_custom_call.1} parent=1 // pred_check
      _
    $region19: #{tpu_custom_call.1} parent=1 // pred_check_branch
      %52 = sbr.rel (0) target = $region21
    $region20: #{tpu_custom_call.1} parent=1 // pred_region
      %53 = dma.done [#allocation3], 32
    $region21: #{tpu_custom_call.1} parent=1 // pred_fallthru
      _
    // Predicated region
    $region22: #{tpu_custom_call.1} parent=1 // pred_check
      _
    $region23: #{tpu_custom_call.1} parent=1 // pred_check_branch
      %55 = sbr.rel (0) target = $region25
    $region24: #{tpu_custom_call.1} parent=1 // pred_region
      %56 = dma.done [#allocation6], 768
    $region25: #{tpu_custom_call.1} parent=1 // pred_fallthru
      _
    // Predicated region
    $region26: #{tpu_custom_call.1} parent=1 // pred_check
      _
    $region27: #{tpu_custom_call.1} parent=1 // pred_check_branch
      %58 = sbr.rel (0) target = $region29
    $region28: #{tpu_custom_call.1} parent=1 // pred_region
      %59 = dma.done [#allocation6], 768
    $region29: #{tpu_custom_call.1} parent=1 // pred_fallthru
      _
    %v61 = vld [vmem:[#allocation2] sm:$0x3]
    %v62 = vpack.c.bf16 %v61, %v61
    %v63 = vld [vmem:[%s1] sm:$0x3]
    %v64 = vpack.c.bf16 %v63, %v63
    %v65 = vld [vmem:[#allocation5] sm:$0xff]
    %v66 = vld [vmem:[#allocation5 + $0x8] sm:$0xf]
    %v67 = vld [vmem:[#allocation5 + $0xc] sm:$0xff]
    %v68 = vld [vmem:[#allocation5 + $0x14] sm:$0xf]
    %v69 = vld [vmem:[#allocation5 + $0x18] sm:$0xff]
    %v70 = vld [vmem:[#allocation5 + $0x20] sm:$0xf]
    %v71 = vld [vmem:[#allocation5 + $0x24] sm:$0xff]
    %v72 = vld [vmem:[#allocation5 + $0x2c] sm:$0xf]
    %v81 = vunpack.c.l.b16 %v65
    %v82 = vunpack.c.h.b16 %v65
    %v83 = vunpack.c.l.b16 %v66
    %v84 = vunpack.c.l.b16 %v67
    %v85 = vunpack.c.h.b16 %v67
    %v86 = vunpack.c.l.b16 %v68
    %v87 = vunpack.c.l.b16 %v69
    %v88 = vunpack.c.h.b16 %v69
    %v89 = vunpack.c.l.b16 %v70
    %v90 = vunpack.c.l.b16 %v71
    %v91 = vunpack.c.h.b16 %v71
    %v92 = vunpack.c.l.b16 %v72
    %v93 = vpack.c.b16 %v84, %v81
    %v94 = vpack.c.b16 %v85, %v82
    %v95 = vpack.c.b16 %v86, %v83
    %v96 = vpack.c.b16 %v90, %v87
    %v97 = vpack.c.b16 %v91, %v88
    %v98 = vpack.c.b16 %v92, %v89
    %vm105 = vcmask 261120
    %v107 = vsel %vm105, %v62, 0
    %109 = vmatprep.subr.bf16.mxu0 %v94
    %110 = vmatpush1.bf16.msra.mxu0 %v93
    %111 = vmatprep.subr.bf16.mxu0 %v97
    %112 = vmatpush1.bf16.msra.mxu0 %v96
    %113 = vmatprep.subr.bf16.mxu0 0
    %114 = vmatpush1.bf16.msra.mxu0 0
    %115 = vmatprep.subr.bf16.mxu0 0
    %116 = vmatpush1.bf16.msra.mxu0 0
    %117 = vmatprep.subr.bf16.mxu0 0
    %118 = vmatpush1.bf16.msra.mxu0 0
    %119 = vmatprep.subr.bf16.mxu0 0
    %120 = vmatpush1.bf16.msra.mxu0 0
    %121 = vmatprep.subr.bf16.mxu0 0
    %122 = vmatpush1.bf16.msra.mxu0 0
    %123 = vmatprep.subr.bf16.mxu0 0
    %124 = vmatpush1.bf16.msra.mxu0 0
    %125 = vmatprep.subr.bf16.mxu0 0
    %126 = vmatpush1.bf16.msra.mxu0 0
    %127 = vmatprep.subr.bf16.mxu0 0
    %128 = vmatpush1.bf16.msra.mxu0 0
    %129 = vmatprep.subr.bf16.mxu0 0
    %130 = vmatpush1.bf16.msra.mxu0 0
    %131 = vmatprep.subr.bf16.mxu0 0
    %132 = vmatpush1.bf16.msra.mxu0 0
    %133 = vmatprep.subr.bf16.mxu0 0
    %134 = vmatpush1.bf16.msra.mxu0 0
    %135 = vmatprep.subr.bf16.mxu0 0
    %136 = vmatpush1.bf16.msra.mxu0 0
    %137 = vmatprep.subr.bf16.mxu0 0
    %138 = vmatpush1.bf16.msra.mxu0 0
    %139 = vmatprep.subr.bf16.mxu0 0
    %140 = vmatpush1.bf16.msra.mxu0 0
    %141 = vmatprep.mubr.bf16.mxu0 0
    %142 = vmatmul.mubr.bf16.gmra.mrb[0].mxu0 %v107
    %v143 = vpop.f32.mrb[0].mxu0
    %v144 = vadd.f32 0.0, %v143
    %v145 = vpop.f32.mrb[0].mxu0
    %v146 = vadd.f32 0.0, %v145
    %v147 = vpop.f32.mrb[0].mxu0
    %v148 = vpop.f32.mrb[0].mxu0
    %149 = vdwg.mxu0
    %150 = vmatprep.subr.bf16.mxu0 0
    %151 = vmatpush1.bf16.msra.mxu0 %v95
    %152 = vmatprep.subr.bf16.mxu0 0
    %153 = vmatpush1.bf16.msra.mxu0 %v98
    %154 = vmatprep.subr.bf16.mxu0 0
    %155 = vmatpush1.bf16.msra.mxu0 0
    %156 = vmatprep.subr.bf16.mxu0 0
    %157 = vmatpush1.bf16.msra.mxu0 0
    %158 = vmatprep.subr.bf16.mxu0 0
    %159 = vmatpush1.bf16.msra.mxu0 0
    %160 = vmatprep.subr.bf16.mxu0 0
    %161 = vmatpush1.bf16.msra.mxu0 0
    %162 = vmatprep.subr.bf16.mxu0 0
    %163 = vmatpush1.bf16.msra.mxu0 0
    %164 = vmatprep.subr.bf16.mxu0 0
    %165 = vmatpush1.bf16.msra.mxu0 0
    %166 = vmatprep.subr.bf16.mxu0 0
    %167 = vmatpush1.bf16.msra.mxu0 0
    %168 = vmatprep.subr.bf16.mxu0 0
    %169 = vmatpush1.bf16.msra.mxu0 0
    %170 = vmatprep.subr.bf16.mxu0 0
    %171 = vmatpush1.bf16.msra.mxu0 0
    %172 = vmatprep.subr.bf16.mxu0 0
    %173 = vmatpush1.bf16.msra.mxu0 0
    %174 = vmatprep.subr.bf16.mxu0 0
    %175 = vmatpush1.bf16.msra.mxu0 0
    %176 = vmatprep.subr.bf16.mxu0 0
    %177 = vmatpush1.bf16.msra.mxu0 0
    %178 = vmatprep.subr.bf16.mxu0 0
    %179 = vmatpush1.bf16.msra.mxu0 0
    %180 = vmatprep.subr.bf16.mxu0 0
    %181 = vmatpush1.bf16.msra.mxu0 0
    %182 = vmatprep.mubr.bf16.mxu0 0
    %183 = vmatmul.mubr.bf16.gmra.mrb[0].mxu0 %v107
    %v184 = vpop.f32.mrb[0].mxu0
    %v185 = vadd.f32 0.0, %v184
    %v186 = vpop.f32.mrb[0].mxu0
    %v187 = vpop.f32.mrb[0].mxu0
    %v188 = vpop.f32.mrb[0].mxu0
    %189 = vdwg.mxu0
    %v193 = vcombine.low %v144, %v146
    %v195 = vunpack.c.l.s4 1983009808
    %v196 = vunpack.c.0.s8 %v195
    %v197 = vlaneseq
    %v198 = vshrl.u32 %v197, 7
    %v199 = vsub.s32 %v196, %v198
    %v200 = vrot.slane %v193, %v199
    %v202 = vunpack.c.l.s4 1983009808
    %v203 = vunpack.c.0.s8 %v202
    %v204 = vlaneseq
    %v205 = vshrl.u32 %v204, 7
    %v206 = vsub.s32 %v203, %v205
    %v207 = vrot.slane %v185, %v206
    %v208 = vcombine.low %v200, %v207
    %210 = vst [vmem:[#allocation8] sm:$0x3f] %v208
    %v211 = vld [vmem:[#allocation7] sm:$0xff]
    %v212 = vld [vmem:[#allocation7 + $0x8] sm:$0xf]
    %v213 = vld [vmem:[#allocation7 + $0xc] sm:$0xff]
    %v214 = vld [vmem:[#allocation7 + $0x14] sm:$0xf]
    %v215 = vld [vmem:[#allocation7 + $0x18] sm:$0xff]
    %v216 = vld [vmem:[#allocation7 + $0x20] sm:$0xf]
    %v217 = vld [vmem:[#allocation7 + $0x24] sm:$0xff]
    %v218 = vld [vmem:[#allocation7 + $0x2c] sm:$0xf]
    %v227 = vunpack.c.l.b16 %v211
    %v228 = vunpack.c.h.b16 %v211
    %v229 = vunpack.c.l.b16 %v212
    %v230 = vunpack.c.l.b16 %v213
    %v231 = vunpack.c.h.b16 %v213
    %v232 = vunpack.c.l.b16 %v214
    %v233 = vunpack.c.l.b16 %v215
    %v234 = vunpack.c.h.b16 %v215
    %v235 = vunpack.c.l.b16 %v216
    %v236 = vunpack.c.l.b16 %v217
    %v237 = vunpack.c.h.b16 %v217
    %v238 = vunpack.c.l.b16 %v218
    %v239 = vpack.c.b16 %v230, %v227
    %v240 = vpack.c.b16 %v231, %v228
    %v241 = vpack.c.b16 %v232, %v229
    %v242 = vpack.c.b16 %v236, %v233
    %v243 = vpack.c.b16 %v237, %v234
    %v244 = vpack.c.b16 %v238, %v235
    %v252 = vsel %vm105, %v64, 0
    %254 = vmatprep.subr.bf16.mxu0 %v240
    %255 = vmatpush1.bf16.msra.mxu0 %v239
    %256 = vmatprep.subr.bf16.mxu0 %v243
    %257 = vmatpush1.bf16.msra.mxu0 %v242
    %258 = vmatprep.subr.bf16.mxu0 0
    %259 = vmatpush1.bf16.msra.mxu0 0
    %260 = vmatprep.subr.bf16.mxu0 0
    %261 = vmatpush1.bf16.msra.mxu0 0
    %262 = vmatprep.subr.bf16.mxu0 0
    %263 = vmatpush1.bf16.msra.mxu0 0
    %264 = vmatprep.subr.bf16.mxu0 0
    %265 = vmatpush1.bf16.msra.mxu0 0
    %266 = vmatprep.subr.bf16.mxu0 0
    %267 = vmatpush1.bf16.msra.mxu0 0
    %268 = vmatprep.subr.bf16.mxu0 0
    %269 = vmatpush1.bf16.msra.mxu0 0
    %270 = vmatprep.subr.bf16.mxu0 0
    %271 = vmatpush1.bf16.msra.mxu0 0
    %272 = vmatprep.subr.bf16.mxu0 0
    %273 = vmatpush1.bf16.msra.mxu0 0
    %274 = vmatprep.subr.bf16.mxu0 0
    %275 = vmatpush1.bf16.msra.mxu0 0
    %276 = vmatprep.subr.bf16.mxu0 0
    %277 = vmatpush1.bf16.msra.mxu0 0
    %278 = vmatprep.subr.bf16.mxu0 0
    %279 = vmatpush1.bf16.msra.mxu0 0
    %280 = vmatprep.subr.bf16.mxu0 0
    %281 = vmatpush1.bf16.msra.mxu0 0
    %282 = vmatprep.subr.bf16.mxu0 0
    %283 = vmatpush1.bf16.msra.mxu0 0
    %284 = vmatprep.subr.bf16.mxu0 0
    %285 = vmatpush1.bf16.msra.mxu0 0
    %286 = vmatprep.mubr.bf16.mxu0 0
    %287 = vmatmul.mubr.bf16.gmra.mrb[0].mxu0 %v252
    %v288 = vpop.f32.mrb[0].mxu0
    %v289 = vadd.f32 0.0, %v288
    %v290 = vpop.f32.mrb[0].mxu0
    %v291 = vadd.f32 0.0, %v290
    %v292 = vpop.f32.mrb[0].mxu0
    %v293 = vpop.f32.mrb[0].mxu0
    %294 = vdwg.mxu0
    %295 = vmatprep.subr.bf16.mxu0 0
    %296 = vmatpush1.bf16.msra.mxu0 %v241
    %297 = vmatprep.subr.bf16.mxu0 0
    %298 = vmatpush1.bf16.msra.mxu0 %v244
    %299 = vmatprep.subr.bf16.mxu0 0
    %300 = vmatpush1.bf16.msra.mxu0 0
    %301 = vmatprep.subr.bf16.mxu0 0
    %302 = vmatpush1.bf16.msra.mxu0 0
    %303 = vmatprep.subr.bf16.mxu0 0
    %304 = vmatpush1.bf16.msra.mxu0 0
    %305 = vmatprep.subr.bf16.mxu0 0
    %306 = vmatpush1.bf16.msra.mxu0 0
    %307 = vmatprep.subr.bf16.mxu0 0
    %308 = vmatpush1.bf16.msra.mxu0 0
    %309 = vmatprep.subr.bf16.mxu0 0
    %310 = vmatpush1.bf16.msra.mxu0 0
    %311 = vmatprep.subr.bf16.mxu0 0
    %312 = vmatpush1.bf16.msra.mxu0 0
    %313 = vmatprep.subr.bf16.mxu0 0
    %314 = vmatpush1.bf16.msra.mxu0 0
    %315 = vmatprep.subr.bf16.mxu0 0
    %316 = vmatpush1.bf16.msra.mxu0 0
    %317 = vmatprep.subr.bf16.mxu0 0
    %318 = vmatpush1.bf16.msra.mxu0 0
    %319 = vmatprep.subr.bf16.mxu0 0
    %320 = vmatpush1.bf16.msra.mxu0 0
    %321 = vmatprep.subr.bf16.mxu0 0
    %322 = vmatpush1.bf16.msra.mxu0 0
    %323 = vmatprep.subr.bf16.mxu0 0
    %324 = vmatpush1.bf16.msra.mxu0 0
    %325 = vmatprep.subr.bf16.mxu0 0
    %326 = vmatpush1.bf16.msra.mxu0 0
    %327 = vmatprep.mubr.bf16.mxu0 0
    %328 = vmatmul.mubr.bf16.gmra.mrb[0].mxu0 %v252
    %v329 = vpop.f32.mrb[0].mxu0
    %v330 = vadd.f32 0.0, %v329
    %v331 = vpop.f32.mrb[0].mxu0
    %v332 = vpop.f32.mrb[0].mxu0
    %v333 = vpop.f32.mrb[0].mxu0
    %334 = vdwg.mxu0
    %v338 = vcombine.low %v289, %v291
    %v340 = vunpack.c.l.s4 1983009808
    %v341 = vunpack.c.0.s8 %v340
    %v342 = vlaneseq
    %v343 = vshrl.u32 %v342, 7
    %v344 = vsub.s32 %v341, %v343
    %v345 = vrot.slane %v338, %v344
    %v347 = vunpack.c.l.s4 1983009808
    %v348 = vunpack.c.0.s8 %v347
    %v349 = vlaneseq
    %v350 = vshrl.u32 %v349, 7
    %v351 = vsub.s32 %v348, %v350
    %v352 = vrot.slane %v330, %v351
    %v353 = vcombine.low %v345, %v352
    %355 = vst [vmem:[#allocation9] sm:$0x3f] %v353
    // Predicated region
    $region30: #{tpu_custom_call.1} parent=1 // pred_check
      _
    $region31: #{tpu_custom_call.1} parent=1 // pred_check_branch
      %357 = sbr.rel (0) target = $region33
    $region32: #{tpu_custom_call.1} parent=1 // pred_region
      %s359 = ssub.s32 96, 96
      %360 = vsyncadd [#allocation4], %s359
      %s362 = sshll.u32 [#allocation8], 4
      %s363 = int_to_ptr.vmem [resolvable:$true] %s362
      %365 = dma.vmem_to_hbm [thread:$0]  %s363, 96, %s4, [#allocation4]
    $region33: #{tpu_custom_call.1} parent=1 // pred_fallthru
      _
    // Predicated region
    $region34: #{tpu_custom_call.1} parent=1 // pred_check
      _
    $region35: #{tpu_custom_call.1} parent=1 // pred_check_branch
      %367 = sbr.rel (0) target = $region37
    $region36: #{tpu_custom_call.1} parent=1 // pred_region
      %s369 = ssub.s32 96, 96
      %370 = vsyncadd [#allocation10], %s369
      %s372 = sshll.u32 [#allocation9], 4
      %s373 = int_to_ptr.vmem [resolvable:$true] %s372
      %375 = dma.vmem_to_hbm [thread:$0]  %s373, 96, %s5, [#allocation10]
    $region37: #{tpu_custom_call.1} parent=1 // pred_fallthru
      _
    // Predicated region
    $region38: #{tpu_custom_call.1} parent=1 // pred_check
      _
    $region39: #{tpu_custom_call.1} parent=1 // pred_check_branch
      %377 = sbr.rel (0) target = $region41
    $region40: #{tpu_custom_call.1} parent=1 // pred_region
      %378 = dma.done [#allocation4], 96
    $region41: #{tpu_custom_call.1} parent=1 // pred_fallthru
      _
    // Predicated region
    $region42: #{tpu_custom_call.1} parent=1 // pred_check
      _
    $region43: #{tpu_custom_call.1} parent=1 // pred_check_branch
      %380 = sbr.rel (0) target = $region45
    $region44: #{tpu_custom_call.1} parent=1 // pred_region
      %381 = dma.done [#allocation10], 96
    $region45: #{tpu_custom_call.1} parent=1 // pred_fallthru
      _
    %382 = vsyncpa [#allocation3], 1
    %383 = vsyncpa [#allocation6], 1
    %384 = vsyncpa [#allocation4], 1
    %385 = vsyncpa [#allocation10], 1

</llo_original>
